<compile_context>
chip_gen: v6e
topology: v6e:2x2x1
jax: 0.10.0
libtpu: 0.0.40
codegen_flags: <defaults>
</compile_context>

<pallas_src>
import functools

import jax
import jax.numpy as jnp
from jax.experimental import pallas as pl
from jax.experimental.pallas import tpu as pltpu

_BN_EPS = 1e-5


def _round_up(a, m):
    return (a + m - 1) // m * m


def _mlp_kernel(
    x_ref,
    w1_ref, b1_ref,
    w2_ref, b2_ref,
    w3_ref, b3_ref,
    wo_ref, bo_ref,
    out_ref,
):
    """Fused (Linear+BN+ReLU) x3 -> Linear.  BN already folded into w/b."""
    mm_dtype = w1_ref.dtype  # matmul input dtype (bf16 by default)

    h = jnp.dot(x_ref[...], w1_ref[...], preferred_element_type=jnp.float32) + b1_ref[...]
    h = jnp.maximum(h, 0.0)

    h = jnp.dot(h.astype(mm_dtype), w2_ref[...], preferred_element_type=jnp.float32) + b2_ref[...]
    h = jnp.maximum(h, 0.0)

    h = jnp.dot(h.astype(mm_dtype), w3_ref[...], preferred_element_type=jnp.float32) + b3_ref[...]
    h = jnp.maximum(h, 0.0)

    out = jnp.dot(h.astype(mm_dtype), wo_ref[...], preferred_element_type=jnp.float32) + bo_ref[...]
    out_ref[...] = out.astype(out_ref.dtype)


def _prepare_params(params, matmul_dtype):
    """Fold eval-mode BatchNorm into the Linear weights/biases, pad to lane-dense
    widths, and cast matmul operands to `matmul_dtype` (biases stay f32)."""

    def fold(w, b, gamma, beta, mean, var):
        scale = gamma / jnp.sqrt(var + _BN_EPS)
        shift = beta - mean * scale
        return w * scale[None, :], b * scale + shift

    w1, b1 = fold(params["w1"], params["b1"],
                  params["g1"], params["be1"], params["m1"], params["v1"])
    w2, b2 = fold(params["w2"], params["b2"],
                  params["g2"], params["be2"], params["m2"], params["v2"])
    w3, b3 = fold(params["w3"], params["b3"],
                  params["g3"], params["be3"], params["m3"], params["v3"])
    wo, bo = params["wo"], params["bo"]

    # Lane-dense padding: hidden-3 width (64 -> 128) and class dim (C -> mult of 128).
    h3 = w3.shape[1]
    h3_pad = _round_up(h3, 128)
    c = wo.shape[1]
    c_pad = _round_up(c, 128)
    w3 = jnp.pad(w3, ((0, 0), (0, h3_pad - h3)))
    b3 = jnp.pad(b3, ((0, h3_pad - h3),))
    wo = jnp.pad(wo, ((0, h3_pad - h3), (0, c_pad - c)))
    bo = jnp.pad(bo, ((0, c_pad - c),))

    cast = lambda w: w.astype(matmul_dtype)
    return dict(
        w1=cast(w1), b1=b1.reshape(1, -1).astype(jnp.float32),
        w2=cast(w2), b2=b2.reshape(1, -1).astype(jnp.float32),
        w3=cast(w3), b3=b3.reshape(1, -1).astype(jnp.float32),
        wo=cast(wo), bo=bo.reshape(1, -1).astype(jnp.float32),
    )


@functools.partial(jax.jit, static_argnames=("batch_tile", "matmul_dtype"))
def multiclass_classification_forward(x, params, batch_tile=None,
                                      matmul_dtype=jnp.bfloat16):
    """x: (B, num_feature) float32.  params: dict of weights/biases/BN stats."""
    B, F = x.shape
    C = params["wo"].shape[1]
    C_pad = _round_up(C, 128)

    p = _prepare_params(params, matmul_dtype)

    if batch_tile is None:
        # Large, generation-friendly tile: 512 is a multiple of 128 (v5e MXU) and
        # 256 (v6e/v7x MXU).  For small batches run a single grid step over the
        # whole (8-padded) batch to avoid per-step overhead.
        batch_tile = min(_round_up(B, 8), 512)
    B_pad = _round_up(B, batch_tile)
    n_tiles = B_pad // batch_tile
    if n_tiles > 1:
        assert batch_tile % 8 == 0, "batch_tile must be a multiple of 8 when tiling"

    x_p = x.astype(matmul_dtype)
    if B_pad != B:
        x_p = jnp.pad(x_p, ((0, B_pad - B), (0, 0)))

    def full(a):
        # Whole (small) parameter array resident in VMEM; constant block index so
        # it is not re-fetched across grid steps.
        return pl.BlockSpec(a.shape, lambda i: (0, 0))

    grid_spec = pltpu.PrefetchScalarGridSpec(
        num_scalar_prefetch=0,
        grid=(n_tiles,),
        in_specs=[
            pl.BlockSpec((batch_tile, F), lambda i: (i, 0)),
            full(p["w1"]), full(p["b1"]),
            full(p["w2"]), full(p["b2"]),
            full(p["w3"]), full(p["b3"]),
            full(p["wo"]), full(p["bo"]),
        ],
        out_specs=pl.BlockSpec((batch_tile, C_pad), lambda i: (i, 0)),
    )

    out = pl.pallas_call(
        _mlp_kernel,
        out_shape=jax.ShapeDtypeStruct((B_pad, C_pad), jnp.float32),
        grid_spec=grid_spec,
        compiler_params=pltpu.CompilerParams(
            dimension_semantics=("parallel",)),
    )(
        x_p,
        p["w1"], p["b1"], p["w2"], p["b2"],
        p["w3"], p["b3"], p["wo"], p["bo"],
    )
    return out[:B, :C]


def init_params(key, num_feature, num_class):
    """Deterministic synthetic init matching the module's shapes.

    BatchNorm stats are made non-trivial so the BN fold is actually exercised."""
    dims = [(num_feature, 512), (512, 128), (128, 64), (64, num_class)]
    names = ["1", "2", "3", "o"]
    params = {}
    keys = jax.random.split(key, 2 * len(dims) + 4 * 3)
    ki = 0
    for (din, dout), nm in zip(dims, names):
        bound = 1.0 / jnp.sqrt(din)
        params[f"w{nm}"] = jax.random.uniform(
            keys[ki], (din, dout), jnp.float32, -bound, bound); ki += 1
        params[f"b{nm}"] = jax.random.uniform(
            keys[ki], (dout,), jnp.float32, -bound, bound); ki += 1
    for nm, d in zip(["1", "2", "3"], [512, 128, 64]):
        params[f"g{nm}"] = jax.random.uniform(keys[ki], (d,), jnp.float32, 0.5, 1.5); ki += 1
        params[f"be{nm}"] = 0.1 * jax.random.normal(keys[ki], (d,), jnp.float32); ki += 1
        params[f"m{nm}"] = 0.1 * jax.random.normal(keys[ki], (d,), jnp.float32); ki += 1
        params[f"v{nm}"] = jax.random.uniform(keys[ki], (d,), jnp.float32, 0.5, 1.5); ki += 1
    return params


def reference_forward(x, params):
    """Pure-JAX f32 reference following the module literally (eval mode)."""
    def bn(h, g, b, m, v):
        return (h - m) / jnp.sqrt(v + _BN_EPS) * g + b

    h = x @ params["w1"] + params["b1"]
    h = jnp.maximum(bn(h, params["g1"], params["be1"], params["m1"], params["v1"]), 0.0)
    h = h @ params["w2"] + params["b2"]
    h = jnp.maximum(bn(h, params["g2"], params["be2"], params["m2"], params["v2"]), 0.0)
    h = h @ params["w3"] + params["b3"]
    h = jnp.maximum(bn(h, params["g3"], params["be3"], params["m3"], params["v3"]), 0.0)
    return h @ params["wo"] + params["bo"]


def matched_reference_forward(x, params, matmul_dtype=jnp.bfloat16):
    """Pure-JAX reference replicating the kernel's exact numerics (BN fold + bf16 dots)."""
    p = _prepare_params(params, matmul_dtype)
    C = params["wo"].shape[1]

    def layer(h, w, b, relu=True):
        h = jnp.dot(h.astype(matmul_dtype), w, preferred_element_type=jnp.float32) + b
        return jnp.maximum(h, 0.0) if relu else h

    h = layer(x, p["w1"], p["b1"])
    h = layer(h, p["w2"], p["b2"])
    h = layer(h, p["w3"], p["b3"])
    h = layer(h, p["wo"], p["bo"], relu=False)
    return h[:, :C]


if __name__ == "__main__":
    num_feature, num_class, batch = 32, 10, 44  # batch not a multiple of 8/16 -> exercises padding

    key = jax.random.PRNGKey(0)
    k_params, k_x = jax.random.split(key)
    params = init_params(k_params, num_feature, num_class)
    x = jax.random.normal(k_x, (batch, num_feature), jnp.float32)

    # Default path: auto batch tile (single grid step at this small batch).
    out = jax.block_until_ready(multiclass_classification_forward(x, params))

    # Tiled path: 3 grid steps of 16 rows, exercises the batch grid + padding.
    out_tiled = jax.block_until_ready(
        multiclass_classification_forward(x, params, batch_tile=16))

    ref_f32 = reference_forward(x, params)
    ref_matched = matched_reference_forward(x, params, jnp.bfloat16)

    assert out.shape == (batch, num_class)
    assert jnp.allclose(out, ref_matched, atol=1e-3, rtol=1e-3), \
        "mismatch vs matched (bf16, BN-folded) JAX reference"
    assert jnp.allclose(out, ref_f32, atol=3e-2, rtol=3e-2), \
        "mismatch vs f32 module reference"
    assert jnp.allclose(out_tiled, out, atol=1e-5, rtol=1e-5), \
        "tiled path disagrees with single-step path"

    print("KERNEL_OK")
</pallas_src>

<mosaic_0001>
module attributes {stable_mosaic.version = 11 : i64} {
  func.func @_mlp_kernel(%arg0: i32, %arg1: memref<48x32xbf16, #tpu.memory_space<vmem>>, %arg2: memref<32x512xbf16, #tpu.memory_space<vmem>>, %arg3: memref<1x512xf32, #tpu.memory_space<vmem>>, %arg4: memref<512x128xbf16, #tpu.memory_space<vmem>>, %arg5: memref<1x128xf32, #tpu.memory_space<vmem>>, %arg6: memref<128x128xbf16, #tpu.memory_space<vmem>>, %arg7: memref<1x128xf32, #tpu.memory_space<vmem>>, %arg8: memref<128x128xbf16, #tpu.memory_space<vmem>>, %arg9: memref<1x128xf32, #tpu.memory_space<vmem>>, %arg10: memref<48x128xf32, #tpu.memory_space<vmem>>) attributes {dimension_semantics = [#tpu.dimension_semantics<parallel>], iteration_bounds = array<i64: 1>, scalar_prefetch = 0 : i64, scratch_operands = 0 : i64, tpu.core_type = #tpu.core_type<tc>, window_params = [{transform_indices = @transform_0, window_bounds = array<i64: 48, 32>}, {pipeline_mode = #tpu.pipeline_mode<synchronous>, transform_indices = @transform_1, window_bounds = array<i64: 32, 512>}, {pipeline_mode = #tpu.pipeline_mode<synchronous>, transform_indices = @transform_2, window_bounds = array<i64: 1, 512>}, {pipeline_mode = #tpu.pipeline_mode<synchronous>, transform_indices = @transform_3, window_bounds = array<i64: 512, 128>}, {pipeline_mode = #tpu.pipeline_mode<synchronous>, transform_indices = @transform_4, window_bounds = array<i64: 1, 128>}, {pipeline_mode = #tpu.pipeline_mode<synchronous>, transform_indices = @transform_5, window_bounds = array<i64: 128, 128>}, {pipeline_mode = #tpu.pipeline_mode<synchronous>, transform_indices = @transform_6, window_bounds = array<i64: 1, 128>}, {pipeline_mode = #tpu.pipeline_mode<synchronous>, transform_indices = @transform_7, window_bounds = array<i64: 128, 128>}, {pipeline_mode = #tpu.pipeline_mode<synchronous>, transform_indices = @transform_8, window_bounds = array<i64: 1, 128>}, {transform_indices = @transform_9, window_bounds = array<i64: 48, 128>}]} {
    %c0 = arith.constant 0 : index
    %c0_0 = arith.constant 0 : index
    %0 = vector.load %arg1[%c0, %c0_0] : memref<48x32xbf16, #tpu.memory_space<vmem>>, vector<48x32xbf16>
    %c0_1 = arith.constant 0 : index
    %c0_2 = arith.constant 0 : index
    %1 = vector.load %arg2[%c0_1, %c0_2] : memref<32x512xbf16, #tpu.memory_space<vmem>>, vector<32x512xbf16>
    %cst = arith.constant dense<0.000000e+00> : vector<48x512xf32>
    %2 = tpu.matmul %0, %1, %cst {dimension_numbers = #tpu.dot_dimension_numbers<[1], [0], [0], [1], [0, 0, 1, 1], [], []>} : vector<48x32xbf16>, vector<32x512xbf16>, vector<48x512xf32> -> vector<48x512xf32>
    %c0_3 = arith.constant 0 : index
    %c0_4 = arith.constant 0 : index
    %3 = vector.load %arg3[%c0_3, %c0_4] : memref<1x512xf32, #tpu.memory_space<vmem>>, vector<1x512xf32>
    %4 = vector.broadcast %3 : vector<1x512xf32> to vector<48x512xf32>
    %5 = arith.addf %2, %4 : vector<48x512xf32>
    %cst_5 = arith.constant 0.000000e+00 : f32
    %6 = vector.broadcast %cst_5 : f32 to vector<48x512xf32>
    %7 = arith.maximumf %5, %6 : vector<48x512xf32>
    %8 = arith.truncf %7 : vector<48x512xf32> to vector<48x512xbf16>
    %c0_6 = arith.constant 0 : index
    %c0_7 = arith.constant 0 : index
    %9 = vector.load %arg4[%c0_6, %c0_7] : memref<512x128xbf16, #tpu.memory_space<vmem>>, vector<512x128xbf16>
    %cst_8 = arith.constant dense<0.000000e+00> : vector<48x128xf32>
    %10 = tpu.matmul %8, %9, %cst_8 {dimension_numbers = #tpu.dot_dimension_numbers<[1], [0], [0], [1], [0, 0, 1, 1], [], []>} : vector<48x512xbf16>, vector<512x128xbf16>, vector<48x128xf32> -> vector<48x128xf32>
    %c0_9 = arith.constant 0 : index
    %c0_10 = arith.constant 0 : index
    %11 = vector.load %arg5[%c0_9, %c0_10] : memref<1x128xf32, #tpu.memory_space<vmem>>, vector<1x128xf32>
    %12 = vector.broadcast %11 : vector<1x128xf32> to vector<48x128xf32>
    %13 = arith.addf %10, %12 : vector<48x128xf32>
    %cst_11 = arith.constant 0.000000e+00 : f32
    %14 = vector.broadcast %cst_11 : f32 to vector<48x128xf32>
    %15 = arith.maximumf %13, %14 : vector<48x128xf32>
    %16 = arith.truncf %15 : vector<48x128xf32> to vector<48x128xbf16>
    %c0_12 = arith.constant 0 : index
    %c0_13 = arith.constant 0 : index
    %17 = vector.load %arg6[%c0_12, %c0_13] : memref<128x128xbf16, #tpu.memory_space<vmem>>, vector<128x128xbf16>
    %cst_14 = arith.constant dense<0.000000e+00> : vector<48x128xf32>
    %18 = tpu.matmul %16, %17, %cst_14 {dimension_numbers = #tpu.dot_dimension_numbers<[1], [0], [0], [1], [0, 0, 1, 1], [], []>} : vector<48x128xbf16>, vector<128x128xbf16>, vector<48x128xf32> -> vector<48x128xf32>
    %c0_15 = arith.constant 0 : index
    %c0_16 = arith.constant 0 : index
    %19 = vector.load %arg7[%c0_15, %c0_16] : memref<1x128xf32, #tpu.memory_space<vmem>>, vector<1x128xf32>
    %20 = vector.broadcast %19 : vector<1x128xf32> to vector<48x128xf32>
    %21 = arith.addf %18, %20 : vector<48x128xf32>
    %cst_17 = arith.constant 0.000000e+00 : f32
    %22 = vector.broadcast %cst_17 : f32 to vector<48x128xf32>
    %23 = arith.maximumf %21, %22 : vector<48x128xf32>
    %24 = arith.truncf %23 : vector<48x128xf32> to vector<48x128xbf16>
    %c0_18 = arith.constant 0 : index
    %c0_19 = arith.constant 0 : index
    %25 = vector.load %arg8[%c0_18, %c0_19] : memref<128x128xbf16, #tpu.memory_space<vmem>>, vector<128x128xbf16>
    %cst_20 = arith.constant dense<0.000000e+00> : vector<48x128xf32>
    %26 = tpu.matmul %24, %25, %cst_20 {dimension_numbers = #tpu.dot_dimension_numbers<[1], [0], [0], [1], [0, 0, 1, 1], [], []>} : vector<48x128xbf16>, vector<128x128xbf16>, vector<48x128xf32> -> vector<48x128xf32>
    %c0_21 = arith.constant 0 : index
    %c0_22 = arith.constant 0 : index
    %27 = vector.load %arg9[%c0_21, %c0_22] : memref<1x128xf32, #tpu.memory_space<vmem>>, vector<1x128xf32>
    %28 = vector.broadcast %27 : vector<1x128xf32> to vector<48x128xf32>
    %29 = arith.addf %26, %28 : vector<48x128xf32>
    %c0_23 = arith.constant 0 : index
    %c0_24 = arith.constant 0 : index
    %30 = vector.load %arg10[%c0_23, %c0_24] : memref<48x128xf32, #tpu.memory_space<vmem>>, vector<48x128xf32>
    tpu.vector_store %arg10[%c0_23, %c0_24], %29 {strides = array<i32>} : memref<48x128xf32, #tpu.memory_space<vmem>>, vector<48x128xf32>,
    return
  }
  func.func @transform_0(%arg0: i32) -> (i32, i32) {
    %c0_i32 = arith.constant 0 : i32
    %c0_i32_0 = arith.constant 0 : i32
    return %arg0, %c0_i32 : i32, i32
  }
  func.func @transform_1(%arg0: i32) -> (i32, i32) {
    %c0_i32 = arith.constant 0 : i32
    %c0_i32_0 = arith.constant 0 : i32
    %c0_i32_1 = arith.constant 0 : i32
    return %c0_i32, %c0_i32_0 : i32, i32
  }
  func.func @transform_2(%arg0: i32) -> (i32, i32) {
    %c0_i32 = arith.constant 0 : i32
    %c0_i32_0 = arith.constant 0 : i32
    %c0_i32_1 = arith.constant 0 : i32
    return %c0_i32, %c0_i32_0 : i32, i32
  }
  func.func @transform_3(%arg0: i32) -> (i32, i32) {
    %c0_i32 = arith.constant 0 : i32
    %c0_i32_0 = arith.constant 0 : i32
    %c0_i32_1 = arith.constant 0 : i32
    return %c0_i32, %c0_i32_0 : i32, i32
  }
  func.func @transform_4(%arg0: i32) -> (i32, i32) {
    %c0_i32 = arith.constant 0 : i32
    %c0_i32_0 = arith.constant 0 : i32
    %c0_i32_1 = arith.constant 0 : i32
    return %c0_i32, %c0_i32_0 : i32, i32
  }
  func.func @transform_5(%arg0: i32) -> (i32, i32) {
    %c0_i32 = arith.constant 0 : i32
    %c0_i32_0 = arith.constant 0 : i32
    %c0_i32_1 = arith.constant 0 : i32
    return %c0_i32, %c0_i32_0 : i32, i32
  }
  func.func @transform_6(%arg0: i32) -> (i32, i32) {
    %c0_i32 = arith.constant 0 : i32
    %c0_i32_0 = arith.constant 0 : i32
    %c0_i32_1 = arith.constant 0 : i32
    return %c0_i32, %c0_i32_0 : i32, i32
  }
  func.func @transform_7(%arg0: i32) -> (i32, i32) {
    %c0_i32 = arith.constant 0 : i32
    %c0_i32_0 = arith.constant 0 : i32
    %c0_i32_1 = arith.constant 0 : i32
    return %c0_i32, %c0_i32_0 : i32, i32
  }
  func.func @transform_8(%arg0: i32) -> (i32, i32) {
    %c0_i32 = arith.constant 0 : i32
    %c0_i32_0 = arith.constant 0 : i32
    %c0_i32_1 = arith.constant 0 : i32
    return %c0_i32, %c0_i32_0 : i32, i32
  }
  func.func @transform_9(%arg0: i32) -> (i32, i32) {
    %c0_i32 = arith.constant 0 : i32
    %c0_i32_0 = arith.constant 0 : i32
    return %arg0, %c0_i32 : i32, i32
  }
}

</mosaic_0001>

<llo_original>
// kernel: multiclass_classification_forward.1
$region0: #{multiclass_classification_forward.1}
  #allocation0 [shape = 'u32[]', space=smem, size = 0x4, offset = 0x4, fixed_abs, tag = 'smem constant byte address 0x4 - core index']
  #allocation1 [shape = 'u32[144,128]{1,0:T(1,128)}', space=vmem, size = 0x12000, scoped, tag = 'internal scratch']
  %s0 = inlined_call_operand.vmem [shape: bf16[48,32], index: 0, kind: input, shape index: {}]
  %s1 = inlined_call_operand.vmem [shape: bf16[32,512], index: 1, kind: input, shape index: {}]
  %s2 = inlined_call_operand.vmem [shape: f32[1,512], index: 2, kind: input, shape index: {}]
  %s3 = inlined_call_operand.vmem [shape: bf16[512,128], index: 3, kind: input, shape index: {}]
  %s4 = inlined_call_operand.vmem [shape: f32[1,128], index: 4, kind: input, shape index: {}]
  %s5 = inlined_call_operand.vmem [shape: bf16[128,128], index: 5, kind: input, shape index: {}]
  %s6 = inlined_call_operand.vmem [shape: f32[1,128], index: 6, kind: input, shape index: {}]
  %s7 = inlined_call_operand.vmem [shape: bf16[128,128], index: 7, kind: input, shape index: {}]
  %s8 = inlined_call_operand.vmem [shape: f32[1,128], index: 8, kind: input, shape index: {}]
  %s9 = inlined_call_operand.vmem [shape: f32[48,128], index: 9, kind: output, shape index: {}]
  %s10 = sld [smem:[#allocation0]]
  $region46: #{multiclass_classification_forward.1} parent=0
    _
  %s12 = ssub.s32 1, %s10
  %s13 = scalar_select 0, %s12, %s10
  // Predicated region
  $region2: #{multiclass_classification_forward.1} parent=0 // pred_check
    _
  $region3: #{multiclass_classification_forward.1} parent=0 // pred_check_branch
    %15 = sbr.rel (0) target = $region5
  $region4: #{multiclass_classification_forward.1} parent=0 // pred_region
    _
  $region5: #{multiclass_classification_forward.1} parent=0 // pred_fallthru
    _
  // Predicated region
  $region6: #{multiclass_classification_forward.1} parent=0 // pred_check
    _
  $region7: #{multiclass_classification_forward.1} parent=0 // pred_check_branch
    %17 = sbr.rel (0) target = $region9
  $region8: #{multiclass_classification_forward.1} parent=0 // pred_region
    _
  $region9: #{multiclass_classification_forward.1} parent=0 // pred_fallthru
    _
  // Predicated region
  $region10: #{multiclass_classification_forward.1} parent=0 // pred_check
    _
  $region11: #{multiclass_classification_forward.1} parent=0 // pred_check_branch
    %19 = sbr.rel (0) target = $region13
  $region12: #{multiclass_classification_forward.1} parent=0 // pred_region
    _
  $region13: #{multiclass_classification_forward.1} parent=0 // pred_fallthru
    _
  // Predicated region
  $region14: #{multiclass_classification_forward.1} parent=0 // pred_check
    _
  $region15: #{multiclass_classification_forward.1} parent=0 // pred_check_branch
    %21 = sbr.rel (0) target = $region17
  $region16: #{multiclass_classification_forward.1} parent=0 // pred_region
    _
  $region17: #{multiclass_classification_forward.1} parent=0 // pred_fallthru
    _
  // Predicated region
  $region18: #{multiclass_classification_forward.1} parent=0 // pred_check
    _
  $region19: #{multiclass_classification_forward.1} parent=0 // pred_check_branch
    %23 = sbr.rel (0) target = $region21
  $region20: #{multiclass_classification_forward.1} parent=0 // pred_region
    _
  $region21: #{multiclass_classification_forward.1} parent=0 // pred_fallthru
    _
  // Predicated region
  $region22: #{multiclass_classification_forward.1} parent=0 // pred_check
    _
  $region23: #{multiclass_classification_forward.1} parent=0 // pred_check_branch
    %25 = sbr.rel (0) target = $region25
  $region24: #{multiclass_classification_forward.1} parent=0 // pred_region
    _
  $region25: #{multiclass_classification_forward.1} parent=0 // pred_fallthru
    _
  // Predicated region
  $region26: #{multiclass_classification_forward.1} parent=0 // pred_check
    _
  $region27: #{multiclass_classification_forward.1} parent=0 // pred_check_branch
    %27 = sbr.rel (0) target = $region29
  $region28: #{multiclass_classification_forward.1} parent=0 // pred_region
    _
  $region29: #{multiclass_classification_forward.1} parent=0 // pred_fallthru
    _
  // Predicated region
  $region30: #{multiclass_classification_forward.1} parent=0 // pred_check
    _
  $region31: #{multiclass_classification_forward.1} parent=0 // pred_check_branch
    %29 = sbr.rel (0) target = $region33
  $region32: #{multiclass_classification_forward.1} parent=0 // pred_region
    _
  $region33: #{multiclass_classification_forward.1} parent=0 // pred_fallthru
    _
  // Predicated region
  $region34: #{multiclass_classification_forward.1} parent=0 // pred_check
    _
  $region35: #{multiclass_classification_forward.1} parent=0 // pred_check_branch
    %31 = sbr.rel (0) target = $region37
  $region36: #{multiclass_classification_forward.1} parent=0 // pred_region
    _
  $region37: #{multiclass_classification_forward.1} parent=0 // pred_fallthru
    _
  %v33 = vld [vmem:[%s0] sm:$0xf]
  %v34 = vld [vmem:[%s0 + $0x4] sm:$0xf]
  %v35 = vld [vmem:[%s0 + $0x8] sm:$0xf]
  %v36 = vld [vmem:[%s0 + $0xc] sm:$0xf]
  %v37 = vld [vmem:[%s0 + $0x10] sm:$0xf]
  %v38 = vld [vmem:[%s0 + $0x14] sm:$0xf]
  %v39 = vld [vmem:[%s1] sm:$0xff]
  %v40 = vld [vmem:[%s1 + $0x8] sm:$0xff]
  %v41 = vld [vmem:[%s1 + $0x10] sm:$0xff]
  %v42 = vld [vmem:[%s1 + $0x18] sm:$0xff]
  %v43 = vld [vmem:[%s1 + $0x20] sm:$0xff]
  %v44 = vld [vmem:[%s1 + $0x28] sm:$0xff]
  %v45 = vld [vmem:[%s1 + $0x30] sm:$0xff]
  %v46 = vld [vmem:[%s1 + $0x38] sm:$0xff]
  %v47 = vld [vmem:[%s2] sm:$0xf]
  %v49 = vlaneseq
  %v50 = vshrl.u32 %v49, 7
  %v51 = vsub.s32 0, %v50
  %v52 = vrot.slane %v47, %v51
  %v53 = vlaneseq
  %v54 = vshrl.u32 %v53, 7
  %v55 = vsub.s32 1, %v54
  %v56 = vrot.slane %v47, %v55
  %v57 = vlaneseq
  %v58 = vshrl.u32 %v57, 7
  %v59 = vsub.s32 2, %v58
  %v60 = vrot.slane %v47, %v59
  %v61 = vlaneseq
  %v62 = vshrl.u32 %v61, 7
  %v63 = vsub.s32 3, %v62
  %v64 = vrot.slane %v47, %v63
  %v75 = vunpack.c.l.b16 %v33
  %v76 = vunpack.c.l.b16 %v34
  %v77 = vunpack.c.l.b16 %v35
  %v78 = vunpack.c.l.b16 %v36
  %v79 = vunpack.c.l.b16 %v37
  %v80 = vunpack.c.l.b16 %v38
  %v81 = vpack.c.b16 %v76, %v75
  %v82 = vpack.c.b16 %v78, %v77
  %v83 = vpack.c.b16 %v80, %v79
  %v92 = vunpack.c.l.b16 %v39
  %v93 = vunpack.c.h.b16 %v39
  %v94 = vunpack.c.l.b16 %v40
  %v95 = vunpack.c.h.b16 %v40
  %v96 = vunpack.c.l.b16 %v41
  %v97 = vunpack.c.h.b16 %v41
  %v98 = vunpack.c.l.b16 %v42
  %v99 = vunpack.c.h.b16 %v42
  %v100 = vunpack.c.l.b16 %v43
  %v101 = vunpack.c.h.b16 %v43
  %v102 = vunpack.c.l.b16 %v44
  %v103 = vunpack.c.h.b16 %v44
  %v104 = vunpack.c.l.b16 %v45
  %v105 = vunpack.c.h.b16 %v45
  %v106 = vunpack.c.l.b16 %v46
  %v107 = vunpack.c.h.b16 %v46
  %v108 = vpack.c.b16 %v96, %v92
  %v109 = vpack.c.b16 %v97, %v93
  %v110 = vpack.c.b16 %v98, %v94
  %v111 = vpack.c.b16 %v99, %v95
  %v112 = vpack.c.b16 %v104, %v100
  %v113 = vpack.c.b16 %v105, %v101
  %v114 = vpack.c.b16 %v106, %v102
  %v115 = vpack.c.b16 %v107, %v103
  %vm124 = vcmask 261120
  %v126 = vsel %vm124, %v81, 0
  %v129 = vsel %vm124, %v82, 0
  %v132 = vsel %vm124, %v83, 0
  %134 = vmatprep.subr.bf16.mxu0 0
  %135 = vmatpush1.bf16.msra.mxu0 0
  %136 = vmatprep.subr.bf16.mxu0 0
  %137 = vmatpush1.bf16.msra.mxu0 0
  %138 = vmatprep.subr.bf16.mxu0 0
  %139 = vmatpush1.bf16.msra.mxu0 0
  %140 = vmatprep.subr.bf16.mxu0 0
  %141 = vmatpush1.bf16.msra.mxu0 0
  %142 = vmatprep.subr.bf16.mxu0 0
  %143 = vmatpush1.bf16.msra.mxu0 0
  %144 = vmatprep.subr.bf16.mxu0 0
  %145 = vmatpush1.bf16.msra.mxu0 0
  %146 = vmatprep.subr.bf16.mxu0 %v113
  %147 = vmatpush1.bf16.msra.mxu0 %v112
  %148 = vmatprep.subr.bf16.mxu0 %v109
  %149 = vmatpush1.bf16.msra.mxu0 %v108
  %150 = vmatprep.subr.bf16.mxu0 0
  %151 = vmatpush2.bf16.msra.mxu0 0
  %152 = vmatprep.subr.bf16.mxu0 0
  %153 = vmatpush2.bf16.msra.mxu0 0
  %154 = vmatprep.subr.bf16.mxu0 0
  %155 = vmatpush2.bf16.msra.mxu0 0
  %156 = vmatprep.subr.bf16.mxu0 0
  %157 = vmatpush2.bf16.msra.mxu0 0
  %158 = vmatprep.subr.bf16.mxu0 0
  %159 = vmatpush2.bf16.msra.mxu0 0
  %160 = vmatprep.subr.bf16.mxu0 0
  %161 = vmatpush2.bf16.msra.mxu0 0
  %162 = vmatprep.subr.bf16.mxu0 0
  %163 = vmatpush2.bf16.msra.mxu0 0
  %164 = vmatprep.subr.bf16.mxu0 0
  %165 = vmatpush2.bf16.msra.mxu0 0
  %166 = vmatprep.mubr.bf16.mxu0 0
  %167 = vmatmul.mubr.bf16.gmra.mxu0 %v126
  %v168 = vpop.f32.mrf.mxu0
  %v169 = vadd.f32 %v52, %v168
  %v170 = vpop.f32.mrf.mxu0
  %v171 = vadd.f32 %v56, %v170
  %v172 = vpop.f32.mrf.mxu0
  %v173 = vadd.f32 %v52, %v172
  %v174 = vpop.f32.mrf.mxu0
  %v175 = vadd.f32 %v56, %v174
  %176 = vmatprep.mubr.bf16.mxu0 0
  %177 = vmatmul.mubr.bf16.gmra.mxu0 %v129
  %v178 = vpop.f32.mrf.mxu0
  %v179 = vadd.f32 %v52, %v178
  %v180 = vpop.f32.mrf.mxu0
  %v181 = vadd.f32 %v56, %v180
  %v182 = vpop.f32.mrf.mxu0
  %v183 = vadd.f32 %v52, %v182
  %v184 = vpop.f32.mrf.mxu0
  %v185 = vadd.f32 %v56, %v184
  %186 = vmatprep.mubr.bf16.mxu0 0
  %187 = vmatmul.mubr.bf16.gmra.mxu0 %v132
  %v188 = vpop.f32.mrf.mxu0
  %v189 = vadd.f32 %v52, %v188
  %v190 = vpop.f32.mrf.mxu0
  %v191 = vadd.f32 %v56, %v190
  %v192 = vpop.f32.mrf.mxu0
  %v193 = vadd.f32 %v52, %v192
  %v194 = vpop.f32.mrf.mxu0
  %v195 = vadd.f32 %v56, %v194
  %196 = vdwg.mxu0
  %197 = vmatprep.subr.bf16.mxu0 0
  %198 = vmatpush1.bf16.msra.mxu0 0
  %199 = vmatprep.subr.bf16.mxu0 0
  %200 = vmatpush1.bf16.msra.mxu0 0
  %201 = vmatprep.subr.bf16.mxu0 0
  %202 = vmatpush1.bf16.msra.mxu0 0
  %203 = vmatprep.subr.bf16.mxu0 0
  %204 = vmatpush1.bf16.msra.mxu0 0
  %205 = vmatprep.subr.bf16.mxu0 0
  %206 = vmatpush1.bf16.msra.mxu0 0
  %207 = vmatprep.subr.bf16.mxu0 0
  %208 = vmatpush1.bf16.msra.mxu0 0
  %209 = vmatprep.subr.bf16.mxu0 %v115
  %210 = vmatpush1.bf16.msra.mxu0 %v114
  %211 = vmatprep.subr.bf16.mxu0 %v111
  %212 = vmatpush1.bf16.msra.mxu0 %v110
  %213 = vmatprep.subr.bf16.mxu0 0
  %214 = vmatpush2.bf16.msra.mxu0 0
  %215 = vmatprep.subr.bf16.mxu0 0
  %216 = vmatpush2.bf16.msra.mxu0 0
  %217 = vmatprep.subr.bf16.mxu0 0
  %218 = vmatpush2.bf16.msra.mxu0 0
  %219 = vmatprep.subr.bf16.mxu0 0
  %220 = vmatpush2.bf16.msra.mxu0 0
  %221 = vmatprep.subr.bf16.mxu0 0
  %222 = vmatpush2.bf16.msra.mxu0 0
  %223 = vmatprep.subr.bf16.mxu0 0
  %224 = vmatpush2.bf16.msra.mxu0 0
  %225 = vmatprep.subr.bf16.mxu0 0
  %226 = vmatpush2.bf16.msra.mxu0 0
  %227 = vmatprep.subr.bf16.mxu0 0
  %228 = vmatpush2.bf16.msra.mxu0 0
  %229 = vmatprep.mubr.bf16.mxu0 0
  %230 = vmatmul.mubr.bf16.gmra.mxu0 %v126
  %v231 = vpop.f32.mrf.mxu0
  %v232 = vadd.f32 %v60, %v231
  %v233 = vpop.f32.mrf.mxu0
  %v234 = vadd.f32 %v64, %v233
  %v235 = vpop.f32.mrf.mxu0
  %v236 = vadd.f32 %v60, %v235
  %v237 = vpop.f32.mrf.mxu0
  %v238 = vadd.f32 %v64, %v237
  %239 = vmatprep.mubr.bf16.mxu0 0
  %240 = vmatmul.mubr.bf16.gmra.mxu0 %v129
  %v241 = vpop.f32.mrf.mxu0
  %v242 = vadd.f32 %v60, %v241
  %v243 = vpop.f32.mrf.mxu0
  %v244 = vadd.f32 %v64, %v243
  %v245 = vpop.f32.mrf.mxu0
  %v246 = vadd.f32 %v60, %v245
  %v247 = vpop.f32.mrf.mxu0
  %v248 = vadd.f32 %v64, %v247
  %249 = vmatprep.mubr.bf16.mxu0 0
  %250 = vmatmul.mubr.bf16.gmra.mxu0 %v132
  %v251 = vpop.f32.mrf.mxu0
  %v252 = vadd.f32 %v60, %v251
  %v253 = vpop.f32.mrf.mxu0
  %v254 = vadd.f32 %v64, %v253
  %v255 = vpop.f32.mrf.mxu0
  %v256 = vadd.f32 %v60, %v255
  %v257 = vpop.f32.mrf.mxu0
  %v258 = vadd.f32 %v64, %v257
  %259 = vdwg.mxu0
  %v260 = vmax.f32 %v169, 0.0
  %v261 = vmax.f32 %v171, 0.0
  %v262 = vmax.f32 %v232, 0.0
  %v263 = vmax.f32 %v234, 0.0
  %v264 = vmax.f32 %v173, 0.0
  %v265 = vmax.f32 %v175, 0.0
  %v266 = vmax.f32 %v236, 0.0
  %v267 = vmax.f32 %v238, 0.0
  %v268 = vmax.f32 %v179, 0.0
  %v269 = vmax.f32 %v181, 0.0
  %v270 = vmax.f32 %v242, 0.0
  %v271 = vmax.f32 %v244, 0.0
  %v272 = vmax.f32 %v183, 0.0
  %v273 = vmax.f32 %v185, 0.0
  %v274 = vmax.f32 %v246, 0.0
  %v275 = vmax.f32 %v248, 0.0
  %v276 = vmax.f32 %v189, 0.0
  %v277 = vmax.f32 %v191, 0.0
  %v278 = vmax.f32 %v252, 0.0
  %v279 = vmax.f32 %v254, 0.0
  %v280 = vmax.f32 %v193, 0.0
  %v281 = vmax.f32 %v195, 0.0
  %v282 = vmax.f32 %v256, 0.0
  %v283 = vmax.f32 %v258, 0.0
  %v284 = vpack.c.bf16 %v264, %v260
  %v285 = vpack.c.bf16 %v265, %v261
  %v286 = vpack.c.bf16 %v266, %v262
  %v287 = vpack.c.bf16 %v267, %v263
  %v288 = vpack.c.bf16 %v272, %v268
  %v289 = vpack.c.bf16 %v273, %v269
  %v290 = vpack.c.bf16 %v274, %v270
  %v291 = vpack.c.bf16 %v275, %v271
  %v292 = vpack.c.bf16 %v280, %v276
  %v293 = vpack.c.bf16 %v281, %v277
  %v294 = vpack.c.bf16 %v282, %v278
  %v295 = vpack.c.bf16 %v283, %v279
  %v296 = vld [vmem:[%s3] sm:$0xf]
  %v297 = vld [vmem:[%s3 + $0x4] sm:$0xf]
  %v298 = vld [vmem:[%s3 + $0x8] sm:$0xf]
  %v299 = vld [vmem:[%s3 + $0xc] sm:$0xf]
  %v300 = vld [vmem:[%s3 + $0x10] sm:$0xf]
  %v301 = vld [vmem:[%s3 + $0x14] sm:$0xf]
  %v302 = vld [vmem:[%s3 + $0x18] sm:$0xf]
  %v303 = vld [vmem:[%s3 + $0x1c] sm:$0xf]
  %v304 = vld [vmem:[%s3 + $0x20] sm:$0xf]
  %v305 = vld [vmem:[%s3 + $0x24] sm:$0xf]
  %v306 = vld [vmem:[%s3 + $0x28] sm:$0xf]
  %v307 = vld [vmem:[%s3 + $0x2c] sm:$0xf]
  %v308 = vld [vmem:[%s3 + $0x30] sm:$0xf]
  %v309 = vld [vmem:[%s3 + $0x34] sm:$0xf]
  %v310 = vld [vmem:[%s3 + $0x38] sm:$0xf]
  %v311 = vld [vmem:[%s3 + $0x3c] sm:$0xf]
  %v312 = vld [vmem:[%s3 + $0x40] sm:$0xf]
  %v313 = vld [vmem:[%s3 + $0x44] sm:$0xf]
  %v314 = vld [vmem:[%s3 + $0x48] sm:$0xf]
  %v315 = vld [vmem:[%s3 + $0x4c] sm:$0xf]
  %v316 = vld [vmem:[%s3 + $0x50] sm:$0xf]
  %v317 = vld [vmem:[%s3 + $0x54] sm:$0xf]
  %v318 = vld [vmem:[%s3 + $0x58] sm:$0xf]
  %v319 = vld [vmem:[%s3 + $0x5c] sm:$0xf]
  %v320 = vld [vmem:[%s3 + $0x60] sm:$0xf]
  %v321 = vld [vmem:[%s3 + $0x64] sm:$0xf]
  %v322 = vld [vmem:[%s3 + $0x68] sm:$0xf]
  %v323 = vld [vmem:[%s3 + $0x6c] sm:$0xf]
  %v324 = vld [vmem:[%s3 + $0x70] sm:$0xf]
  %v325 = vld [vmem:[%s3 + $0x74] sm:$0xf]
  %v326 = vld [vmem:[%s3 + $0x78] sm:$0xf]
  %v327 = vld [vmem:[%s3 + $0x7c] sm:$0xf]
  %v328 = vld [vmem:[%s3 + $0x80] sm:$0xf]
  %v329 = vld [vmem:[%s3 + $0x84] sm:$0xf]
  %v330 = vld [vmem:[%s3 + $0x88] sm:$0xf]
  %v331 = vld [vmem:[%s3 + $0x8c] sm:$0xf]
  %v332 = vld [vmem:[%s3 + $0x90] sm:$0xf]
  %v333 = vld [vmem:[%s3 + $0x94] sm:$0xf]
  %v334 = vld [vmem:[%s3 + $0x98] sm:$0xf]
  %v335 = vld [vmem:[%s3 + $0x9c] sm:$0xf]
  %v336 = vld [vmem:[%s3 + $0xa0] sm:$0xf]
  %v337 = vld [vmem:[%s3 + $0xa4] sm:$0xf]
  %v338 = vld [vmem:[%s3 + $0xa8] sm:$0xf]
  %v339 = vld [vmem:[%s3 + $0xac] sm:$0xf]
  %v340 = vld [vmem:[%s3 + $0xb0] sm:$0xf]
  %v341 = vld [vmem:[%s3 + $0xb4] sm:$0xf]
  %v342 = vld [vmem:[%s3 + $0xb8] sm:$0xf]
  %v343 = vld [vmem:[%s3 + $0xbc] sm:$0xf]
  %v344 = vld [vmem:[%s3 + $0xc0] sm:$0xf]
  %v345 = vld [vmem:[%s3 + $0xc4] sm:$0xf]
  %v346 = vld [vmem:[%s3 + $0xc8] sm:$0xf]
  %v347 = vld [vmem:[%s3 + $0xcc] sm:$0xf]
  %v348 = vld [vmem:[%s3 + $0xd0] sm:$0xf]
  %v349 = vld [vmem:[%s3 + $0xd4] sm:$0xf]
  %v350 = vld [vmem:[%s3 + $0xd8] sm:$0xf]
  %v351 = vld [vmem:[%s3 + $0xdc] sm:$0xf]
  %v352 = vld [vmem:[%s3 + $0xe0] sm:$0xf]
  %v353 = vld [vmem:[%s3 + $0xe4] sm:$0xf]
  %v354 = vld [vmem:[%s3 + $0xe8] sm:$0xf]
  %v355 = vld [vmem:[%s3 + $0xec] sm:$0xf]
  %v356 = vld [vmem:[%s3 + $0xf0] sm:$0xf]
  %v357 = vld [vmem:[%s3 + $0xf4] sm:$0xf]
  %v358 = vld [vmem:[%s3 + $0xf8] sm:$0xf]
  %v359 = vld [vmem:[%s3 + $0xfc] sm:$0xf]
  %v360 = vld [vmem:[%s4] sm:$0x1]
  %v362 = vlaneseq
  %v363 = vshrl.u32 %v362, 7
  %v364 = vsub.s32 0, %v363
  %v365 = vrot.slane %v360, %v364
  %v431 = vunpack.c.l.b16 %v296
  %v432 = vunpack.c.l.b16 %v297
  %v433 = vunpack.c.l.b16 %v298
  %v434 = vunpack.c.l.b16 %v299
  %v435 = vunpack.c.l.b16 %v300
  %v436 = vunpack.c.l.b16 %v301
  %v437 = vunpack.c.l.b16 %v302
  %v438 = vunpack.c.l.b16 %v303
  %v439 = vunpack.c.l.b16 %v304
  %v440 = vunpack.c.l.b16 %v305
  %v441 = vunpack.c.l.b16 %v306
  %v442 = vunpack.c.l.b16 %v307
  %v443 = vunpack.c.l.b16 %v308
  %v444 = vunpack.c.l.b16 %v309
  %v445 = vunpack.c.l.b16 %v310
  %v446 = vunpack.c.l.b16 %v311
  %v447 = vunpack.c.l.b16 %v312
  %v448 = vunpack.c.l.b16 %v313
  %v449 = vunpack.c.l.b16 %v314
  %v450 = vunpack.c.l.b16 %v315
  %v451 = vunpack.c.l.b16 %v316
  %v452 = vunpack.c.l.b16 %v317
  %v453 = vunpack.c.l.b16 %v318
  %v454 = vunpack.c.l.b16 %v319
  %v455 = vunpack.c.l.b16 %v320
  %v456 = vunpack.c.l.b16 %v321
  %v457 = vunpack.c.l.b16 %v322
  %v458 = vunpack.c.l.b16 %v323
  %v459 = vunpack.c.l.b16 %v324
  %v460 = vunpack.c.l.b16 %v325
  %v461 = vunpack.c.l.b16 %v326
  %v462 = vunpack.c.l.b16 %v327
  %v463 = vunpack.c.l.b16 %v328
  %v464 = vunpack.c.l.b16 %v329
  %v465 = vunpack.c.l.b16 %v330
  %v466 = vunpack.c.l.b16 %v331
  %v467 = vunpack.c.l.b16 %v332
  %v468 = vunpack.c.l.b16 %v333
  %v469 = vunpack.c.l.b16 %v334
  %v470 = vunpack.c.l.b16 %v335
  %v471 = vunpack.c.l.b16 %v336
  %v472 = vunpack.c.l.b16 %v337
  %v473 = vunpack.c.l.b16 %v338
  %v474 = vunpack.c.l.b16 %v339
  %v475 = vunpack.c.l.b16 %v340
  %v476 = vunpack.c.l.b16 %v341
  %v477 = vunpack.c.l.b16 %v342
  %v478 = vunpack.c.l.b16 %v343
  %v479 = vunpack.c.l.b16 %v344
  %v480 = vunpack.c.l.b16 %v345
  %v481 = vunpack.c.l.b16 %v346
  %v482 = vunpack.c.l.b16 %v347
  %v483 = vunpack.c.l.b16 %v348
  %v484 = vunpack.c.l.b16 %v349
  %v485 = vunpack.c.l.b16 %v350
  %v486 = vunpack.c.l.b16 %v351
  %v487 = vunpack.c.l.b16 %v352
  %v488 = vunpack.c.l.b16 %v353
  %v489 = vunpack.c.l.b16 %v354
  %v490 = vunpack.c.l.b16 %v355
  %v491 = vunpack.c.l.b16 %v356
  %v492 = vunpack.c.l.b16 %v357
  %v493 = vunpack.c.l.b16 %v358
  %v494 = vunpack.c.l.b16 %v359
  %v495 = vpack.c.b16 %v432, %v431
  %v496 = vpack.c.b16 %v434, %v433
  %v497 = vpack.c.b16 %v436, %v435
  %v498 = vpack.c.b16 %v438, %v437
  %v499 = vpack.c.b16 %v440, %v439
  %v500 = vpack.c.b16 %v442, %v441
  %v501 = vpack.c.b16 %v444, %v443
  %v502 = vpack.c.b16 %v446, %v445
  %v503 = vpack.c.b16 %v448, %v447
  %v504 = vpack.c.b16 %v450, %v449
  %v505 = vpack.c.b16 %v452, %v451
  %v506 = vpack.c.b16 %v454, %v453
  %v507 = vpack.c.b16 %v456, %v455
  %v508 = vpack.c.b16 %v458, %v457
  %v509 = vpack.c.b16 %v460, %v459
  %v510 = vpack.c.b16 %v462, %v461
  %v511 = vpack.c.b16 %v464, %v463
  %v512 = vpack.c.b16 %v466, %v465
  %v513 = vpack.c.b16 %v468, %v467
  %v514 = vpack.c.b16 %v470, %v469
  %v515 = vpack.c.b16 %v472, %v471
  %v516 = vpack.c.b16 %v474, %v473
  %v517 = vpack.c.b16 %v476, %v475
  %v518 = vpack.c.b16 %v478, %v477
  %v519 = vpack.c.b16 %v480, %v479
  %v520 = vpack.c.b16 %v482, %v481
  %v521 = vpack.c.b16 %v484, %v483
  %v522 = vpack.c.b16 %v486, %v485
  %v523 = vpack.c.b16 %v488, %v487
  %v524 = vpack.c.b16 %v490, %v489
  %v525 = vpack.c.b16 %v492, %v491
  %v526 = vpack.c.b16 %v494, %v493
  %559 = vmatprep.subr.bf16.mxu0 0
  %560 = vmatpush1.bf16.msra.mxu0 %v502
  %561 = vmatprep.subr.bf16.mxu0 0
  %562 = vmatpush1.bf16.msra.mxu0 %v501
  %563 = vmatprep.subr.bf16.mxu0 0
  %564 = vmatpush1.bf16.msra.mxu0 %v500
  %565 = vmatprep.subr.bf16.mxu0 0
  %566 = vmatpush1.bf16.msra.mxu0 %v499
  %567 = vmatprep.subr.bf16.mxu0 0
  %568 = vmatpush1.bf16.msra.mxu0 %v498
  %569 = vmatprep.subr.bf16.mxu0 0
  %570 = vmatpush1.bf16.msra.mxu0 %v497
  %571 = vmatprep.subr.bf16.mxu0 0
  %572 = vmatpush1.bf16.msra.mxu0 %v496
  %573 = vmatprep.subr.bf16.mxu0 0
  %574 = vmatpush1.bf16.msra.mxu0 %v495
  %575 = vmatprep.subr.bf16.mxu0 0
  %576 = vmatpush2.bf16.msra.mxu0 %v510
  %577 = vmatprep.subr.bf16.mxu0 0
  %578 = vmatpush2.bf16.msra.mxu0 %v509
  %579 = vmatprep.subr.bf16.mxu0 0
  %580 = vmatpush2.bf16.msra.mxu0 %v508
  %581 = vmatprep.subr.bf16.mxu0 0
  %582 = vmatpush2.bf16.msra.mxu0 %v507
  %583 = vmatprep.subr.bf16.mxu0 0
  %584 = vmatpush2.bf16.msra.mxu0 %v506
  %585 = vmatprep.subr.bf16.mxu0 0
  %586 = vmatpush2.bf16.msra.mxu0 %v505
  %587 = vmatprep.subr.bf16.mxu0 0
  %588 = vmatpush2.bf16.msra.mxu0 %v504
  %589 = vmatprep.subr.bf16.mxu0 0
  %590 = vmatpush2.bf16.msra.mxu0 %v503
  %591 = vmatprep.mubr.bf16.mxu0 %v285
  %592 = vmatmul.mubr.bf16.gmra.mxu0 %v284
  %v593 = vpop.f32.mrf.mxu0
  %v594 = vadd.f32 %v365, %v593
  %v595 = vpop.f32.mrf.mxu0
  %v596 = vpop.f32.mrf.mxu0
  %v597 = vadd.f32 %v365, %v596
  %v598 = vpop.f32.mrf.mxu0
  %599 = vmatprep.mubr.bf16.mxu0 %v289
  %600 = vmatmul.mubr.bf16.gmra.mxu0 %v288
  %v601 = vpop.f32.mrf.mxu0
  %v602 = vadd.f32 %v365, %v601
  %v603 = vpop.f32.mrf.mxu0
  %v604 = vpop.f32.mrf.mxu0
  %v605 = vadd.f32 %v365, %v604
  %v606 = vpop.f32.mrf.mxu0
  %607 = vmatprep.mubr.bf16.mxu0 %v293
  %608 = vmatmul.mubr.bf16.gmra.mxu0 %v292
  %v609 = vpop.f32.mrf.mxu0
  %v610 = vadd.f32 %v365, %v609
  %v611 = vpop.f32.mrf.mxu0
  %v612 = vpop.f32.mrf.mxu0
  %v613 = vadd.f32 %v365, %v612
  %v614 = vpop.f32.mrf.mxu0
  %615 = vdwg.mxu0
  %616 = vmatprep.subr.bf16.mxu0 0
  %617 = vmatpush1.bf16.msra.mxu0 %v518
  %618 = vmatprep.subr.bf16.mxu0 0
  %619 = vmatpush1.bf16.msra.mxu0 %v517
  %620 = vmatprep.subr.bf16.mxu0 0
  %621 = vmatpush1.bf16.msra.mxu0 %v516
  %622 = vmatprep.subr.bf16.mxu0 0
  %623 = vmatpush1.bf16.msra.mxu0 %v515
  %624 = vmatprep.subr.bf16.mxu0 0
  %625 = vmatpush1.bf16.msra.mxu0 %v514
  %626 = vmatprep.subr.bf16.mxu0 0
  %627 = vmatpush1.bf16.msra.mxu0 %v513
  %628 = vmatprep.subr.bf16.mxu0 0
  %629 = vmatpush1.bf16.msra.mxu0 %v512
  %630 = vmatprep.subr.bf16.mxu0 0
  %631 = vmatpush1.bf16.msra.mxu0 %v511
  %632 = vmatprep.subr.bf16.mxu0 0
  %633 = vmatpush2.bf16.msra.mxu0 %v526
  %634 = vmatprep.subr.bf16.mxu0 0
  %635 = vmatpush2.bf16.msra.mxu0 %v525
  %636 = vmatprep.subr.bf16.mxu0 0
  %637 = vmatpush2.bf16.msra.mxu0 %v524
  %638 = vmatprep.subr.bf16.mxu0 0
  %639 = vmatpush2.bf16.msra.mxu0 %v523
  %640 = vmatprep.subr.bf16.mxu0 0
  %641 = vmatpush2.bf16.msra.mxu0 %v522
  %642 = vmatprep.subr.bf16.mxu0 0
  %643 = vmatpush2.bf16.msra.mxu0 %v521
  %644 = vmatprep.subr.bf16.mxu0 0
  %645 = vmatpush2.bf16.msra.mxu0 %v520
  %646 = vmatprep.subr.bf16.mxu0 0
  %647 = vmatpush2.bf16.msra.mxu0 %v519
  %648 = vmatprep.mubr.bf16.mxu0 %v287
  %649 = vmatmul.mubr.bf16.gmra.mxu0 %v286
  %v650 = vpop.f32.mrf.mxu0
  %v651 = vadd.f32 %v594, %v650
  %v652 = vpop.f32.mrf.mxu0
  %v653 = vpop.f32.mrf.mxu0
  %v654 = vadd.f32 %v597, %v653
  %v655 = vpop.f32.mrf.mxu0
  %656 = vmatprep.mubr.bf16.mxu0 %v291
  %657 = vmatmul.mubr.bf16.gmra.mxu0 %v290
  %v658 = vpop.f32.mrf.mxu0
  %v659 = vadd.f32 %v602, %v658
  %v660 = vpop.f32.mrf.mxu0
  %v661 = vpop.f32.mrf.mxu0
  %v662 = vadd.f32 %v605, %v661
  %v663 = vpop.f32.mrf.mxu0
  %664 = vmatprep.mubr.bf16.mxu0 %v295
  %665 = vmatmul.mubr.bf16.gmra.mxu0 %v294
  %v666 = vpop.f32.mrf.mxu0
  %v667 = vadd.f32 %v610, %v666
  %v668 = vpop.f32.mrf.mxu0
  %v669 = vpop.f32.mrf.mxu0
  %v670 = vadd.f32 %v613, %v669
  %v671 = vpop.f32.mrf.mxu0
  %672 = vdwg.mxu0
  %v673 = vmax.f32 %v651, 0.0
  %v674 = vmax.f32 %v654, 0.0
  %v675 = vmax.f32 %v659, 0.0
  %v676 = vmax.f32 %v662, 0.0
  %v677 = vmax.f32 %v667, 0.0
  %v678 = vmax.f32 %v670, 0.0
  %v679 = vpack.c.bf16 %v674, %v673
  %v680 = vpack.c.bf16 %v676, %v675
  %v681 = vpack.c.bf16 %v678, %v677
  %v682 = vld [vmem:[%s5] sm:$0xf]
  %v683 = vld [vmem:[%s5 + $0x4] sm:$0xf]
  %v684 = vld [vmem:[%s5 + $0x8] sm:$0xf]
  %v685 = vld [vmem:[%s5 + $0xc] sm:$0xf]
  %v686 = vld [vmem:[%s5 + $0x10] sm:$0xf]
  %v687 = vld [vmem:[%s5 + $0x14] sm:$0xf]
  %v688 = vld [vmem:[%s5 + $0x18] sm:$0xf]
  %v689 = vld [vmem:[%s5 + $0x1c] sm:$0xf]
  %v690 = vld [vmem:[%s5 + $0x20] sm:$0xf]
  %v691 = vld [vmem:[%s5 + $0x24] sm:$0xf]
  %v692 = vld [vmem:[%s5 + $0x28] sm:$0xf]
  %v693 = vld [vmem:[%s5 + $0x2c] sm:$0xf]
  %v694 = vld [vmem:[%s5 + $0x30] sm:$0xf]
  %v695 = vld [vmem:[%s5 + $0x34] sm:$0xf]
  %v696 = vld [vmem:[%s5 + $0x38] sm:$0xf]
  %v697 = vld [vmem:[%s5 + $0x3c] sm:$0xf]
  %v698 = vld [vmem:[%s6] sm:$0x1]
  %v700 = vlaneseq
  %v701 = vshrl.u32 %v700, 7
  %v702 = vsub.s32 0, %v701
  %v703 = vrot.slane %v698, %v702
  %v721 = vunpack.c.l.b16 %v682
  %v722 = vunpack.c.l.b16 %v683
  %v723 = vunpack.c.l.b16 %v684
  %v724 = vunpack.c.l.b16 %v685
  %v725 = vunpack.c.l.b16 %v686
  %v726 = vunpack.c.l.b16 %v687
  %v727 = vunpack.c.l.b16 %v688
  %v728 = vunpack.c.l.b16 %v689
  %v729 = vunpack.c.l.b16 %v690
  %v730 = vunpack.c.l.b16 %v691
  %v731 = vunpack.c.l.b16 %v692
  %v732 = vunpack.c.l.b16 %v693
  %v733 = vunpack.c.l.b16 %v694
  %v734 = vunpack.c.l.b16 %v695
  %v735 = vunpack.c.l.b16 %v696
  %v736 = vunpack.c.l.b16 %v697
  %v737 = vpack.c.b16 %v722, %v721
  %v738 = vpack.c.b16 %v724, %v723
  %v739 = vpack.c.b16 %v726, %v725
  %v740 = vpack.c.b16 %v728, %v727
  %v741 = vpack.c.b16 %v730, %v729
  %v742 = vpack.c.b16 %v732, %v731
  %v743 = vpack.c.b16 %v734, %v733
  %v744 = vpack.c.b16 %v736, %v735
  %753 = vmatprep.subr.bf16.mxu0 0
  %754 = vmatpush1.bf16.msra.mxu0 %v744
  %755 = vmatprep.subr.bf16.mxu0 0
  %756 = vmatpush1.bf16.msra.mxu0 %v743
  %757 = vmatprep.subr.bf16.mxu0 0
  %758 = vmatpush1.bf16.msra.mxu0 %v742
  %759 = vmatprep.subr.bf16.mxu0 0
  %760 = vmatpush1.bf16.msra.mxu0 %v741
  %761 = vmatprep.subr.bf16.mxu0 0
  %762 = vmatpush1.bf16.msra.mxu0 %v740
  %763 = vmatprep.subr.bf16.mxu0 0
  %764 = vmatpush1.bf16.msra.mxu0 %v739
  %765 = vmatprep.subr.bf16.mxu0 0
  %766 = vmatpush1.bf16.msra.mxu0 %v738
  %767 = vmatprep.subr.bf16.mxu0 0
  %768 = vmatpush1.bf16.msra.mxu0 %v737
  %769 = vmatprep.subr.bf16.mxu0 0
  %770 = vmatpush2.bf16.msra.mxu0 0
  %771 = vmatprep.subr.bf16.mxu0 0
  %772 = vmatpush2.bf16.msra.mxu0 0
  %773 = vmatprep.subr.bf16.mxu0 0
  %774 = vmatpush2.bf16.msra.mxu0 0
  %775 = vmatprep.subr.bf16.mxu0 0
  %776 = vmatpush2.bf16.msra.mxu0 0
  %777 = vmatprep.subr.bf16.mxu0 0
  %778 = vmatpush2.bf16.msra.mxu0 0
  %779 = vmatprep.subr.bf16.mxu0 0
  %780 = vmatpush2.bf16.msra.mxu0 0
  %781 = vmatprep.subr.bf16.mxu0 0
  %782 = vmatpush2.bf16.msra.mxu0 0
  %783 = vmatprep.subr.bf16.mxu0 0
  %784 = vmatpush2.bf16.msra.mxu0 0
  %785 = vmatprep.mubr.bf16.mxu0 0
  %786 = vmatmul.mubr.bf16.gmra.mxu0 %v679
  %v787 = vpop.f32.mrf.mxu0
  %v788 = vadd.f32 %v703, %v787
  %v789 = vpop.f32.mrf.mxu0
  %v790 = vpop.f32.mrf.mxu0
  %v791 = vadd.f32 %v703, %v790
  %v792 = vpop.f32.mrf.mxu0
  %793 = vmatprep.mubr.bf16.mxu0 0
  %794 = vmatmul.mubr.bf16.gmra.mxu0 %v680
  %v795 = vpop.f32.mrf.mxu0
  %v796 = vadd.f32 %v703, %v795
  %v797 = vpop.f32.mrf.mxu0
  %v798 = vpop.f32.mrf.mxu0
  %v799 = vadd.f32 %v703, %v798
  %v800 = vpop.f32.mrf.mxu0
  %801 = vmatprep.mubr.bf16.mxu0 0
  %802 = vmatmul.mubr.bf16.gmra.mxu0 %v681
  %v803 = vpop.f32.mrf.mxu0
  %v804 = vadd.f32 %v703, %v803
  %v805 = vpop.f32.mrf.mxu0
  %v806 = vpop.f32.mrf.mxu0
  %v807 = vadd.f32 %v703, %v806
  %v808 = vpop.f32.mrf.mxu0
  %809 = vdwg.mxu0
  %v810 = vmax.f32 %v788, 0.0
  %v811 = vmax.f32 %v791, 0.0
  %v812 = vmax.f32 %v796, 0.0
  %v813 = vmax.f32 %v799, 0.0
  %v814 = vmax.f32 %v804, 0.0
  %v815 = vmax.f32 %v807, 0.0
  %v816 = vpack.c.bf16 %v811, %v810
  %v817 = vpack.c.bf16 %v813, %v812
  %v818 = vpack.c.bf16 %v815, %v814
  %v819 = vld [vmem:[%s7] sm:$0xf]
  %v820 = vld [vmem:[%s7 + $0x4] sm:$0xf]
  %v821 = vld [vmem:[%s7 + $0x8] sm:$0xf]
  %v822 = vld [vmem:[%s7 + $0xc] sm:$0xf]
  %v823 = vld [vmem:[%s7 + $0x10] sm:$0xf]
  %v824 = vld [vmem:[%s7 + $0x14] sm:$0xf]
  %v825 = vld [vmem:[%s7 + $0x18] sm:$0xf]
  %v826 = vld [vmem:[%s7 + $0x1c] sm:$0xf]
  %v827 = vld [vmem:[%s7 + $0x20] sm:$0xf]
  %v828 = vld [vmem:[%s7 + $0x24] sm:$0xf]
  %v829 = vld [vmem:[%s7 + $0x28] sm:$0xf]
  %v830 = vld [vmem:[%s7 + $0x2c] sm:$0xf]
  %v831 = vld [vmem:[%s7 + $0x30] sm:$0xf]
  %v832 = vld [vmem:[%s7 + $0x34] sm:$0xf]
  %v833 = vld [vmem:[%s7 + $0x38] sm:$0xf]
  %v834 = vld [vmem:[%s7 + $0x3c] sm:$0xf]
  %v835 = vld [vmem:[%s8] sm:$0x1]
  %v837 = vlaneseq
  %v838 = vshrl.u32 %v837, 7
  %v839 = vsub.s32 0, %v838
  %v840 = vrot.slane %v835, %v839
  %v858 = vunpack.c.l.b16 %v819
  %v859 = vunpack.c.l.b16 %v820
  %v860 = vunpack.c.l.b16 %v821
  %v861 = vunpack.c.l.b16 %v822
  %v862 = vunpack.c.l.b16 %v823
  %v863 = vunpack.c.l.b16 %v824
  %v864 = vunpack.c.l.b16 %v825
  %v865 = vunpack.c.l.b16 %v826
  %v866 = vunpack.c.l.b16 %v827
  %v867 = vunpack.c.l.b16 %v828
  %v868 = vunpack.c.l.b16 %v829
  %v869 = vunpack.c.l.b16 %v830
  %v870 = vunpack.c.l.b16 %v831
  %v871 = vunpack.c.l.b16 %v832
  %v872 = vunpack.c.l.b16 %v833
  %v873 = vunpack.c.l.b16 %v834
  %v874 = vpack.c.b16 %v859, %v858
  %v875 = vpack.c.b16 %v861, %v860
  %v876 = vpack.c.b16 %v863, %v862
  %v877 = vpack.c.b16 %v865, %v864
  %v878 = vpack.c.b16 %v867, %v866
  %v879 = vpack.c.b16 %v869, %v868
  %v880 = vpack.c.b16 %v871, %v870
  %v881 = vpack.c.b16 %v873, %v872
  %890 = vmatprep.subr.bf16.mxu0 0
  %891 = vmatpush1.bf16.msra.mxu0 %v881
  %892 = vmatprep.subr.bf16.mxu0 0
  %893 = vmatpush1.bf16.msra.mxu0 %v880
  %894 = vmatprep.subr.bf16.mxu0 0
  %895 = vmatpush1.bf16.msra.mxu0 %v879
  %896 = vmatprep.subr.bf16.mxu0 0
  %897 = vmatpush1.bf16.msra.mxu0 %v878
  %898 = vmatprep.subr.bf16.mxu0 0
  %899 = vmatpush1.bf16.msra.mxu0 %v877
  %900 = vmatprep.subr.bf16.mxu0 0
  %901 = vmatpush1.bf16.msra.mxu0 %v876
  %902 = vmatprep.subr.bf16.mxu0 0
  %903 = vmatpush1.bf16.msra.mxu0 %v875
  %904 = vmatprep.subr.bf16.mxu0 0
  %905 = vmatpush1.bf16.msra.mxu0 %v874
  %906 = vmatprep.subr.bf16.mxu0 0
  %907 = vmatpush2.bf16.msra.mxu0 0
  %908 = vmatprep.subr.bf16.mxu0 0
  %909 = vmatpush2.bf16.msra.mxu0 0
  %910 = vmatprep.subr.bf16.mxu0 0
  %911 = vmatpush2.bf16.msra.mxu0 0
  %912 = vmatprep.subr.bf16.mxu0 0
  %913 = vmatpush2.bf16.msra.mxu0 0
  %914 = vmatprep.subr.bf16.mxu0 0
  %915 = vmatpush2.bf16.msra.mxu0 0
  %916 = vmatprep.subr.bf16.mxu0 0
  %917 = vmatpush2.bf16.msra.mxu0 0
  %918 = vmatprep.subr.bf16.mxu0 0
  %919 = vmatpush2.bf16.msra.mxu0 0
  %920 = vmatprep.subr.bf16.mxu0 0
  %921 = vmatpush2.bf16.msra.mxu0 0
  %922 = vmatprep.mubr.bf16.mxu0 0
  %923 = vmatmul.mubr.bf16.gmra.mxu0 %v816
  %v924 = vpop.f32.mrf.mxu0
  %v925 = vadd.f32 %v840, %v924
  %v926 = vpop.f32.mrf.mxu0
  %v927 = vpop.f32.mrf.mxu0
  %v928 = vadd.f32 %v840, %v927
  %v929 = vpop.f32.mrf.mxu0
  %930 = vmatprep.mubr.bf16.mxu0 0
  %931 = vmatmul.mubr.bf16.gmra.mxu0 %v817
  %v932 = vpop.f32.mrf.mxu0
  %v933 = vadd.f32 %v840, %v932
  %v934 = vpop.f32.mrf.mxu0
  %v935 = vpop.f32.mrf.mxu0
  %v936 = vadd.f32 %v840, %v935
  %v937 = vpop.f32.mrf.mxu0
  %938 = vmatprep.mubr.bf16.mxu0 0
  %939 = vmatmul.mubr.bf16.gmra.mxu0 %v818
  %v940 = vpop.f32.mrf.mxu0
  %v941 = vadd.f32 %v840, %v940
  %v942 = vpop.f32.mrf.mxu0
  %v943 = vpop.f32.mrf.mxu0
  %v944 = vadd.f32 %v840, %v943
  %v945 = vpop.f32.mrf.mxu0
  %946 = vdwg.mxu0
  %947 = vst [vmem:[%s9] sm:$0xff] %v925
  %948 = vst [vmem:[%s9 + $0x8] sm:$0xff] %v928
  %949 = vst [vmem:[%s9 + $0x10] sm:$0xff] %v933
  %950 = vst [vmem:[%s9 + $0x18] sm:$0xff] %v936
  %951 = vst [vmem:[%s9 + $0x20] sm:$0xff] %v941
  %952 = vst [vmem:[%s9 + $0x28] sm:$0xff] %v944
  // Predicated region
  $region38: #{multiclass_classification_forward.1} parent=0 // pred_check
    _
  $region39: #{multiclass_classification_forward.1} parent=0 // pred_check_branch
    %954 = sbr.rel (0) target = $region41
  $region40: #{multiclass_classification_forward.1} parent=0 // pred_region
    _
  $region41: #{multiclass_classification_forward.1} parent=0 // pred_fallthru
    _
  // Predicated region
  $region42: #{multiclass_classification_forward.1} parent=0 // pred_check
    _
  $region43: #{multiclass_classification_forward.1} parent=0 // pred_check_branch
    %956 = sbr.rel (0) target = $region45
  $region44: #{multiclass_classification_forward.1} parent=0 // pred_region
    _
  $region45: #{multiclass_classification_forward.1} parent=0 // pred_fallthru
    _

</llo_original>
